<compile_context>
chip_gen: v6e
topology: v6e:2x2x1
jax: 0.10.0
libtpu: 0.0.40
codegen_flags: <defaults>
</compile_context>

<pallas_src>
import functools
import math

import jax
import jax.numpy as jnp
from jax import lax
from jax.experimental import pallas as pl
from jax.experimental.pallas import tpu as pltpu

_NEG = -1e30  # finite "-inf" so masked lanes never produce NaNs


def _round_up(x, m):
    return (x + m - 1) // m * m


def _pick_tb(batch):
    """Largest batch tile that divides B and keeps sublanes (8) dense."""
    for tb in (256, 128, 64, 32, 16, 8):
        if batch % tb == 0:
            return tb
    return batch  # block == full array dim is always legal


def _pick_tk(d, tb, np_, tk_budget_bytes=8 << 20):
    """Largest K tile (multiple of 128, <= D rounded) whose double-buffered
    bf16 x- and W-tiles stay within a modest VMEM budget."""
    dp128 = _round_up(d, 128)
    tk = dp128
    while tk > 128:
        streamed = 2 * 2 * (tb * tk + tk * np_)  # 2 bufs x 2 bytes (bf16)
        if streamed <= tk_budget_bytes:
            break
        tk -= 128
    return max(tk, 128)


def _ce_sum(logits_masked, iota, labels):
    """Sum over rows of (logsumexp(row) - row[label]).

    `logits_masked` already has padded classes set to a large negative value.
    The picked logit is a single select+reduce (no f32 one-hot matmul).
    """
    m = jnp.max(logits_masked, axis=-1, keepdims=True)
    lse = jnp.log(jnp.sum(jnp.exp(logits_masked - m), axis=-1, keepdims=True)) + m
    picked = jnp.sum(jnp.where(iota == labels, logits_masked, 0.0),
                     axis=-1, keepdims=True)
    return jnp.sum(lse - picked)


def _base_ce_kernel(stu_ref, lab_ref, loss_ref, *, n_valid, batch_total):
    """distillation_type == 'none': only the base cross-entropy."""
    tb, np_ = stu_ref.shape
    iota = lax.broadcasted_iota(jnp.int32, (tb, np_), 1)
    valid = iota < n_valid
    stu = jnp.where(valid, stu_ref[...].astype(jnp.float32), _NEG)
    partial = _ce_sum(stu, iota, lab_ref[...]) / batch_total
    loss_ref[...] = jnp.full(loss_ref.shape, partial, dtype=jnp.float32)


def _distill_kernel(x_ref, w_ref, bias_ref, stu_ref, kd_ref, lab_ref,
                    loss_ref, acc_ref, *, distillation_type, alpha, tau,
                    n_valid, batch_total):
    k = pl.program_id(1)

    @pl.when(k == 0)
    def _init():
        acc_ref[...] = jnp.zeros_like(acc_ref)

    # Teacher linear layer, one K-chunk per grid step (bf16 in, f32 accumulate).
    acc_ref[...] += jnp.dot(x_ref[...], w_ref[...],
                            preferred_element_type=jnp.float32)

    @pl.when(k == pl.num_programs(1) - 1)
    def _epilogue():
        tb, np_ = acc_ref.shape
        iota = lax.broadcasted_iota(jnp.int32, (tb, np_), 1)
        valid = iota < n_valid
        lab = lab_ref[...]

        # ---- base criterion: CE(outputs, labels), partial sum of this block ----
        stu = jnp.where(valid, stu_ref[...].astype(jnp.float32), _NEG)
        base = _ce_sum(stu, iota, lab) / batch_total

        # Teacher logits for this batch block (padded classes masked).
        teacher = jnp.where(valid, acc_ref[...] + bias_ref[...], _NEG)

        if distillation_type == 'soft':
            # F.kl_div(log_softmax(kd/T), log_softmax(teacher/T), 'sum',
            #          log_target=True) * T*T / kd.numel()
            inv_tau = 1.0 / tau
            skd = jnp.where(valid, kd_ref[...].astype(jnp.float32), _NEG) * inv_tau
            tch = teacher * inv_tau
            ms = jnp.max(skd, axis=-1, keepdims=True)
            lse_s = jnp.log(jnp.sum(jnp.exp(skd - ms), axis=-1, keepdims=True)) + ms
            logp_s = skd - lse_s
            mt = jnp.max(tch, axis=-1, keepdims=True)
            et = jnp.exp(tch - mt)                        # reused: unnormalized p_t
            sum_t = jnp.sum(et, axis=-1, keepdims=True)
            logp_t = tch - (jnp.log(sum_t) + mt)
            p_t = et * pl.reciprocal(sum_t, approx=True)  # EUP slot, no 2nd exp pass
            kl = jnp.sum(jnp.where(valid, p_t * (logp_t - logp_s), 0.0))
            dist = kl * (tau * tau) / (batch_total * n_valid)
        else:  # 'hard'
            # F.cross_entropy(outputs_kd, teacher.argmax(dim=1))
            kd = jnp.where(valid, kd_ref[...].astype(jnp.float32), _NEG)
            t_max = jnp.max(teacher, axis=-1, keepdims=True)
            t_arg = jnp.min(jnp.where(teacher >= t_max, iota, np_),
                            axis=-1, keepdims=True)       # first-occurrence argmax
            dist = _ce_sum(kd, iota, t_arg) / batch_total

        total = base * (1.0 - alpha) + dist * alpha
        loss_ref[...] = jnp.full(loss_ref.shape, total, dtype=jnp.float32)


def distillation_loss(inputs, outputs, outputs_kd, labels, teacher_w, teacher_b,
                      *, distillation_type='soft', alpha=0.5, tau=3.0, tk=None):
    """Pallas implementation of DistillationLoss.forward.

    inputs:      [B, C, H, W]  fed to the synthetic (linear) teacher
    outputs:     [B, N]        student class-token logits (base criterion)
    outputs_kd:  [B, N]        student dist-token logits
    labels:      [B]           int class labels
    teacher_w:   [C*H*W, N], teacher_b: [1, N]
    Returns scalar loss (float32).
    """
    assert distillation_type in ('none', 'soft', 'hard')
    B, N = outputs.shape
    NP = _round_up(N, 128)                  # lane-dense class axis
    TB = _pick_tb(B)
    num_b = B // TB

    labels2d = labels.reshape(B, 1).astype(jnp.int32)
    stu = jnp.pad(outputs, ((0, 0), (0, NP - N)))          # keep caller dtype

    out_shape = jax.ShapeDtypeStruct((num_b, 8, 128), jnp.float32)
    out_spec = pl.BlockSpec((1, 8, 128), lambda b, *_: (b, 0, 0))

    if distillation_type == 'none':
        # Specialized call: teacher weights / inputs / outputs_kd never DMA'd.
        kernel = functools.partial(_base_ce_kernel, n_valid=N, batch_total=B)
        partial = pl.pallas_call(
            kernel,
            out_shape=out_shape,
            grid=(num_b,),
            in_specs=[
                pl.BlockSpec((TB, NP), lambda b: (b, 0)),
                pl.BlockSpec((TB, 1), lambda b: (b, 0)),
            ],
            out_specs=pl.BlockSpec((1, 8, 128), lambda b: (b, 0, 0)),
            compiler_params=pltpu.CompilerParams(
                dimension_semantics=("parallel",)),
        )(stu, labels2d)
        return jnp.sum(partial[:, 0, 0])

    # ---- teacher (soft / hard) path ----
    D = math.prod(inputs.shape[1:])
    TK = _pick_tk(D, TB, NP) if tk is None else min(int(tk), _round_up(D, 128))
    DP = _round_up(D, TK)
    num_k = DP // TK

    x = jnp.pad(inputs.reshape(B, D).astype(jnp.bfloat16),     # bf16 feed to MXU
                ((0, 0), (0, DP - D)))
    w = jnp.pad(teacher_w.astype(jnp.bfloat16),
                ((0, DP - D), (0, NP - N)))                     # zero rows/cols: exact
    bias = jnp.pad(teacher_b.reshape(1, N).astype(jnp.float32),
                   ((0, 0), (0, NP - N)))
    kd = jnp.pad(outputs_kd, ((0, 0), (0, NP - N)))             # keep caller dtype

    # VMEM budget: double-buffered streamed tiles + resident logits + scratch.
    streamed = 2 * 2 * (TB * TK + TK * NP)                      # bf16 x + W tiles
    resident = 2 * TB * NP * (stu.dtype.itemsize + kd.dtype.itemsize) \
        + 2 * (4 * NP + 4 * TB) + 2 * 8 * 128 * 4               # bias, labels, out
    scratch = 4 * TB * NP
    vmem_limit = int(min(2 * (streamed + resident + scratch) + (8 << 20), 64 << 20))

    kernel = functools.partial(
        _distill_kernel, distillation_type=distillation_type,
        alpha=float(alpha), tau=float(tau), n_valid=N, batch_total=B)

    partial = pl.pallas_call(
        kernel,
        out_shape=out_shape,
        grid=(num_b, num_k),
        in_specs=[
            pl.BlockSpec((TB, TK), lambda b, k: (b, k)),    # x, streamed over D
            pl.BlockSpec((TK, NP), lambda b, k: (k, 0)),    # teacher W, streamed
            pl.BlockSpec((1, NP), lambda b, k: (0, 0)),     # teacher bias (resident)
            pl.BlockSpec((TB, NP), lambda b, k: (b, 0)),    # outputs (class token)
            pl.BlockSpec((TB, NP), lambda b, k: (b, 0)),    # outputs_kd (dist token)
            pl.BlockSpec((TB, 1), lambda b, k: (b, 0)),     # labels
        ],
        out_specs=out_spec,
        scratch_shapes=[pltpu.VMEM((TB, NP), jnp.float32)],
        compiler_params=pltpu.CompilerParams(
            dimension_semantics=("parallel", "arbitrary"),
            vmem_limit_bytes=vmem_limit),
    )(x, w, bias, stu, kd, labels2d)
    return jnp.sum(partial[:, 0, 0])


def _reference(inputs, outputs, outputs_kd, labels, teacher_w, teacher_b, *,
               distillation_type, alpha, tau):
    """Pure-JAX reference mirroring the PyTorch semantics (bf16 teacher)."""
    B, N = outputs.shape
    logp = jax.nn.log_softmax(outputs.astype(jnp.float32), axis=1)
    base = -jnp.mean(jnp.take_along_axis(logp, labels[:, None], axis=1))
    if distillation_type == 'none':
        return base
    x = inputs.reshape(B, -1).astype(jnp.bfloat16)
    teacher = jnp.dot(x, teacher_w.astype(jnp.bfloat16),
                      preferred_element_type=jnp.float32) \
        + teacher_b.astype(jnp.float32)
    if distillation_type == 'soft':
        lp_s = jax.nn.log_softmax(outputs_kd.astype(jnp.float32) / tau, axis=1)
        lp_t = jax.nn.log_softmax(teacher / tau, axis=1)
        kl = jnp.sum(jnp.exp(lp_t) * (lp_t - lp_s))
        dist = kl * tau * tau / (B * N)
    else:
        lp_k = jax.nn.log_softmax(outputs_kd.astype(jnp.float32), axis=1)
        tlab = jnp.argmax(teacher, axis=1)
        dist = -jnp.mean(jnp.take_along_axis(lp_k, tlab[:, None], axis=1))
    return base * (1 - alpha) + dist * alpha


if __name__ == "__main__":
    key = jax.random.PRNGKey(0)
    k1, k2, k3, k4, k5, k6 = jax.random.split(key, 6)

    B, C, H, W = 8, 4, 16, 16
    N = 16                       # number of classes
    D = C * H * W

    inputs = jax.random.normal(k1, (B, C, H, W), dtype=jnp.float32)
    outputs = jax.random.normal(k2, (B, N), dtype=jnp.float32)       # class token
    outputs_kd = jax.random.normal(k3, (B, N), dtype=jnp.float32)    # dist token
    labels = jax.random.randint(k4, (B,), 0, N, dtype=jnp.int32)

    # Deterministic synthetic teacher (bf16 linear classifier).
    teacher_w = (jax.random.normal(k5, (D, N), dtype=jnp.float32) * 0.02
                 ).astype(jnp.bfloat16)
    teacher_b = jax.random.normal(k6, (1, N), dtype=jnp.float32) * 0.1

    alpha, tau = 0.5, 3.0
    for dist_type in ('soft', 'hard', 'none'):
        loss = distillation_loss(inputs, outputs, outputs_kd, labels,
                                 teacher_w, teacher_b,
                                 distillation_type=dist_type, alpha=alpha, tau=tau)
        loss = jax.block_until_ready(loss)
        ref = _reference(inputs, outputs, outputs_kd, labels, teacher_w, teacher_b,
                         distillation_type=dist_type, alpha=alpha, tau=tau)
        assert jnp.allclose(loss, ref, rtol=2e-3, atol=2e-3), (dist_type, loss, ref)

    print("KERNEL_OK")
</pallas_src>

<mosaic_0001>
module attributes {stable_mosaic.version = 11 : i64} {
  func.func @_distill_kernel(%arg0: i32, %arg1: i32, %arg2: memref<8x1024xbf16, #tpu.memory_space<vmem>>, %arg3: memref<1024x128xbf16, #tpu.memory_space<vmem>>, %arg4: memref<1x128xf32, #tpu.memory_space<vmem>>, %arg5: memref<8x128xf32, #tpu.memory_space<vmem>>, %arg6: memref<8x128xf32, #tpu.memory_space<vmem>>, %arg7: memref<8x1xi32, #tpu.memory_space<vmem>>, %arg8: memref<1x8x128xf32, #tpu.memory_space<vmem>>, %arg9: memref<8x128xf32, #tpu.memory_space<vmem>>) attributes {dimension_semantics = [#tpu.dimension_semantics<parallel>, #tpu.dimension_semantics<arbitrary>], iteration_bounds = array<i64: 1, 1>, scalar_prefetch = 0 : i64, scratch_operands = 1 : i64, tpu.core_type = #tpu.core_type<tc>, window_params = [{transform_indices = @transform_0, window_bounds = array<i64: 8, 1024>}, {transform_indices = @transform_1, window_bounds = array<i64: 1024, 128>}, {pipeline_mode = #tpu.pipeline_mode<synchronous>, transform_indices = @transform_2, window_bounds = array<i64: 1, 128>}, {transform_indices = @transform_3, window_bounds = array<i64: 8, 128>}, {transform_indices = @transform_4, window_bounds = array<i64: 8, 128>}, {transform_indices = @transform_5, window_bounds = array<i64: 8, 1>}, {transform_indices = @transform_6, window_bounds = array<i64: 1, 8, 128>}]} {
    %c0_i32 = arith.constant 0 : i32
    %0 = arith.cmpi eq, %arg1, %c0_i32 : i32
    %1 = arith.extui %0 : i1 to i32
    %c0_i32_0 = arith.constant 0 : i32
    %2 = arith.cmpi ne, %1, %c0_i32_0 : i32
    scf.if %2 {
      %cst_10 = arith.constant 0.000000e+00 : f32
      %12 = vector.broadcast %cst_10 : f32 to vector<8x128xf32>
      %c0_11 = arith.constant 0 : index
      %c0_12 = arith.constant 0 : index
      %13 = vector.load %arg9[%c0_11, %c0_12] : memref<8x128xf32, #tpu.memory_space<vmem>>, vector<8x128xf32>
      tpu.vector_store %arg9[%c0_11, %c0_12], %12 {strides = array<i32>} : memref<8x128xf32, #tpu.memory_space<vmem>>, vector<8x128xf32>,
    } else {
    }
    %c0 = arith.constant 0 : index
    %c0_1 = arith.constant 0 : index
    %3 = vector.load %arg9[%c0, %c0_1] : memref<8x128xf32, #tpu.memory_space<vmem>>, vector<8x128xf32>
    %c0_2 = arith.constant 0 : index
    %c0_3 = arith.constant 0 : index
    %4 = vector.load %arg2[%c0_2, %c0_3] : memref<8x1024xbf16, #tpu.memory_space<vmem>>, vector<8x1024xbf16>
    %c0_4 = arith.constant 0 : index
    %c0_5 = arith.constant 0 : index
    %5 = vector.load %arg3[%c0_4, %c0_5] : memref<1024x128xbf16, #tpu.memory_space<vmem>>, vector<1024x128xbf16>
    %cst = arith.constant dense<0.000000e+00> : vector<8x128xf32>
    %6 = tpu.matmul %4, %5, %cst {dimension_numbers = #tpu.dot_dimension_numbers<[1], [0], [0], [1], [0, 0, 1, 1], [], []>} : vector<8x1024xbf16>, vector<1024x128xbf16>, vector<8x128xf32> -> vector<8x128xf32>
    %7 = arith.addf %3, %6 : vector<8x128xf32>
    %c0_6 = arith.constant 0 : index
    %c0_7 = arith.constant 0 : index
    %8 = vector.load %arg9[%c0_6, %c0_7] : memref<8x128xf32, #tpu.memory_space<vmem>>, vector<8x128xf32>
    tpu.vector_store %arg9[%c0_6, %c0_7], %7 {strides = array<i32>} : memref<8x128xf32, #tpu.memory_space<vmem>>, vector<8x128xf32>,
    %c0_i32_8 = arith.constant 0 : i32
    %9 = arith.cmpi eq, %arg1, %c0_i32_8 : i32
    %10 = arith.extui %9 : i1 to i32
    %c0_i32_9 = arith.constant 0 : i32
    %11 = arith.cmpi ne, %10, %c0_i32_9 : i32
    scf.if %11 {
      %12 = tpu.iota {dimensions = array<i32: 1>} : vector<8x128xi32>
      %c16_i32 = arith.constant 16 : i32
      %13 = vector.broadcast %c16_i32 : i32 to vector<8x128xi32>
      %14 = arith.cmpi slt, %12, %13 : vector<8x128xi32>
      %c0_10 = arith.constant 0 : index
      %c0_11 = arith.constant 0 : index
      %15 = vector.load %arg7[%c0_10, %c0_11] : memref<8x1xi32, #tpu.memory_space<vmem>>, vector<8x1xi32>
      %c0_12 = arith.constant 0 : index
      %c0_13 = arith.constant 0 : index
      %16 = vector.load %arg5[%c0_12, %c0_13] : memref<8x128xf32, #tpu.memory_space<vmem>>, vector<8x128xf32>
      %cst_14 = arith.constant -1.000000e+30 : f32
      %17 = vector.broadcast %cst_14 : f32 to vector<8x128xf32>
      %18 = arith.select %14, %16, %17 : vector<8x128xi1>, vector<8x128xf32>
      %cst_15 = arith.constant dense<0xFF800000> : vector<8xf32>
      %19 = vector.multi_reduction <maximumf>, %18, %cst_15 [1] : vector<8x128xf32> to vector<8xf32>
      %20 = vector.shape_cast %19 : vector<8xf32> to vector<8x1xf32>
      %21 = vector.broadcast %20 : vector<8x1xf32> to vector<8x128xf32>
      %22 = arith.subf %18, %21 : vector<8x128xf32>
      %23 = math.exp %22 : vector<8x128xf32>
      %cst_16 = arith.constant dense<0.000000e+00> : vector<8xf32>
      %24 = vector.multi_reduction <add>, %23, %cst_16 [1] : vector<8x128xf32> to vector<8xf32>
      %25 = vector.shape_cast %24 : vector<8xf32> to vector<8x1xf32>
      %26 = math.log %25 : vector<8x1xf32>
      %27 = arith.addf %26, %20 : vector<8x1xf32>
      %28 = vector.broadcast %15 : vector<8x1xi32> to vector<8x128xi32>
      %29 = arith.cmpi eq, %12, %28 : vector<8x128xi32>
      %cst_17 = arith.constant 0.000000e+00 : f32
      %30 = vector.broadcast %cst_17 : f32 to vector<8x128xf32>
      %31 = arith.select %29, %18, %30 : vector<8x128xi1>, vector<8x128xf32>
      %cst_18 = arith.constant dense<0.000000e+00> : vector<8xf32>
      %32 = vector.multi_reduction <add>, %31, %cst_18 [1] : vector<8x128xf32> to vector<8xf32>
      %33 = vector.shape_cast %32 : vector<8xf32> to vector<8x1xf32>
      %34 = arith.subf %27, %33 : vector<8x1xf32>
      %35 = vector.shape_cast %34 : vector<8x1xf32> to vector<1x8x1xf32>
      %cst_19 = arith.constant dense<0.000000e+00> : vector<1xf32>
      %36 = vector.multi_reduction <add>, %35, %cst_19 [1, 2] : vector<1x8x1xf32> to vector<1xf32>
      %37 = vector.shape_cast %36 : vector<1xf32> to vector<1x1x1xf32>
      %38 = vector.extract %37[0, 0, 0] : f32 from vector<1x1x1xf32>
      %cst_20 = arith.constant 8.000000e+00 : f32
      %39 = arith.divf %38, %cst_20 : f32
      %c0_21 = arith.constant 0 : index
      %c0_22 = arith.constant 0 : index
      %40 = vector.load %arg9[%c0_21, %c0_22] : memref<8x128xf32, #tpu.memory_space<vmem>>, vector<8x128xf32>
      %c0_23 = arith.constant 0 : index
      %c0_24 = arith.constant 0 : index
      %41 = vector.load %arg4[%c0_23, %c0_24] : memref<1x128xf32, #tpu.memory_space<vmem>>, vector<1x128xf32>
      %42 = vector.broadcast %41 : vector<1x128xf32> to vector<8x128xf32>
      %43 = arith.addf %40, %42 : vector<8x128xf32>
      %cst_25 = arith.constant -1.000000e+30 : f32
      %44 = vector.broadcast %cst_25 : f32 to vector<8x128xf32>
      %45 = arith.select %14, %43, %44 : vector<8x128xi1>, vector<8x128xf32>
      %c0_26 = arith.constant 0 : index
      %c0_27 = arith.constant 0 : index
      %46 = vector.load %arg6[%c0_26, %c0_27] : memref<8x128xf32, #tpu.memory_space<vmem>>, vector<8x128xf32>
      %cst_28 = arith.constant -1.000000e+30 : f32
      %47 = vector.broadcast %cst_28 : f32 to vector<8x128xf32>
      %48 = arith.select %14, %46, %47 : vector<8x128xi1>, vector<8x128xf32>
      %cst_29 = arith.constant 0.333333343 : f32
      %49 = vector.broadcast %cst_29 : f32 to vector<8x128xf32>
      %50 = arith.mulf %48, %49 : vector<8x128xf32>
      %cst_30 = arith.constant 0.333333343 : f32
      %51 = vector.broadcast %cst_30 : f32 to vector<8x128xf32>
      %52 = arith.mulf %45, %51 : vector<8x128xf32>
      %cst_31 = arith.constant dense<0xFF800000> : vector<8xf32>
      %53 = vector.multi_reduction <maximumf>, %50, %cst_31 [1] : vector<8x128xf32> to vector<8xf32>
      %54 = vector.shape_cast %53 : vector<8xf32> to vector<8x1xf32>
      %55 = vector.broadcast %54 : vector<8x1xf32> to vector<8x128xf32>
      %56 = arith.subf %50, %55 : vector<8x128xf32>
      %57 = math.exp %56 : vector<8x128xf32>
      %cst_32 = arith.constant dense<0.000000e+00> : vector<8xf32>
      %58 = vector.multi_reduction <add>, %57, %cst_32 [1] : vector<8x128xf32> to vector<8xf32>
      %59 = vector.shape_cast %58 : vector<8xf32> to vector<8x1xf32>
      %60 = math.log %59 : vector<8x1xf32>
      %61 = arith.addf %60, %54 : vector<8x1xf32>
      %62 = vector.broadcast %61 : vector<8x1xf32> to vector<8x128xf32>
      %63 = arith.subf %50, %62 : vector<8x128xf32>
      %cst_33 = arith.constant dense<0xFF800000> : vector<8xf32>
      %64 = vector.multi_reduction <maximumf>, %52, %cst_33 [1] : vector<8x128xf32> to vector<8xf32>
      %65 = vector.shape_cast %64 : vector<8xf32> to vector<8x1xf32>
      %66 = vector.broadcast %65 : vector<8x1xf32> to vector<8x128xf32>
      %67 = arith.subf %52, %66 : vector<8x128xf32>
      %68 = math.exp %67 : vector<8x128xf32>
      %cst_34 = arith.constant dense<0.000000e+00> : vector<8xf32>
      %69 = vector.multi_reduction <add>, %68, %cst_34 [1] : vector<8x128xf32> to vector<8xf32>
      %70 = vector.shape_cast %69 : vector<8xf32> to vector<8x1xf32>
      %71 = math.log %70 : vector<8x1xf32>
      %72 = arith.addf %71, %65 : vector<8x1xf32>
      %73 = vector.broadcast %72 : vector<8x1xf32> to vector<8x128xf32>
      %74 = arith.subf %52, %73 : vector<8x128xf32>
      %75 = tpu.reciprocal %70 {approx = true} : vector<8x1xf32> -> vector<8x1xf32>
      %76 = vector.broadcast %75 : vector<8x1xf32> to vector<8x128xf32>
      %77 = arith.mulf %68, %76 : vector<8x128xf32>
      %78 = arith.subf %74, %63 : vector<8x128xf32>
      %79 = arith.mulf %77, %78 : vector<8x128xf32>
      %cst_35 = arith.constant 0.000000e+00 : f32
      %80 = vector.broadcast %cst_35 : f32 to vector<8x128xf32>
      %81 = arith.select %14, %79, %80 : vector<8x128xi1>, vector<8x128xf32>
      %82 = vector.shape_cast %81 : vector<8x128xf32> to vector<1x8x128xf32>
      %cst_36 = arith.constant dense<0.000000e+00> : vector<1xf32>
      %83 = vector.multi_reduction <add>, %82, %cst_36 [1, 2] : vector<1x8x128xf32> to vector<1xf32>
      %84 = vector.shape_cast %83 : vector<1xf32> to vector<1x1x1xf32>
      %85 = vector.extract %84[0, 0, 0] : f32 from vector<1x1x1xf32>
      %cst_37 = arith.constant 9.000000e+00 : f32
      %86 = arith.mulf %85, %cst_37 : f32
      %cst_38 = arith.constant 1.280000e+02 : f32
      %87 = arith.divf %86, %cst_38 : f32
      %cst_39 = arith.constant 5.000000e-01 : f32
      %88 = arith.mulf %39, %cst_39 : f32
      %cst_40 = arith.constant 5.000000e-01 : f32
      %89 = arith.mulf %87, %cst_40 : f32
      %90 = arith.addf %88, %89 : f32
      %91 = vector.broadcast %90 : f32 to vector<1x8x128xf32>
      %c0_41 = arith.constant 0 : index
      %c0_42 = arith.constant 0 : index
      %c0_43 = arith.constant 0 : index
      %92 = vector.load %arg8[%c0_41, %c0_42, %c0_43] : memref<1x8x128xf32, #tpu.memory_space<vmem>>, vector<1x8x128xf32>
      tpu.vector_store %arg8[%c0_41, %c0_42, %c0_43], %91 {strides = array<i32>} : memref<1x8x128xf32, #tpu.memory_space<vmem>>, vector<1x8x128xf32>,
    } else {
    }
    return
  }
  func.func @transform_0(%arg0: i32, %arg1: i32) -> (i32, i32) {
    %c0_i32 = arith.constant 0 : i32
    return %arg0, %arg1 : i32, i32
  }
  func.func @transform_1(%arg0: i32, %arg1: i32) -> (i32, i32) {
    %c0_i32 = arith.constant 0 : i32
    %c0_i32_0 = arith.constant 0 : i32
    return %arg1, %c0_i32 : i32, i32
  }
  func.func @transform_2(%arg0: i32, %arg1: i32) -> (i32, i32) {
    %c0_i32 = arith.constant 0 : i32
    %c0_i32_0 = arith.constant 0 : i32
    %c0_i32_1 = arith.constant 0 : i32
    return %c0_i32, %c0_i32_0 : i32, i32
  }
  func.func @transform_3(%arg0: i32, %arg1: i32) -> (i32, i32) {
    %c0_i32 = arith.constant 0 : i32
    %c0_i32_0 = arith.constant 0 : i32
    return %arg0, %c0_i32 : i32, i32
  }
  func.func @transform_4(%arg0: i32, %arg1: i32) -> (i32, i32) {
    %c0_i32 = arith.constant 0 : i32
    %c0_i32_0 = arith.constant 0 : i32
    return %arg0, %c0_i32 : i32, i32
  }
  func.func @transform_5(%arg0: i32, %arg1: i32) -> (i32, i32) {
    %c0_i32 = arith.constant 0 : i32
    %c0_i32_0 = arith.constant 0 : i32
    return %arg0, %c0_i32 : i32, i32
  }
  func.func @transform_6(%arg0: i32, %arg1: i32) -> (i32, i32, i32) {
    %c0_i32 = arith.constant 0 : i32
    %c0_i32_0 = arith.constant 0 : i32
    %c0_i32_1 = arith.constant 0 : i32
    return %arg0, %c0_i32, %c0_i32_0 : i32, i32, i32
  }
}

</mosaic_0001>

<llo_original>
// kernel: tpu_custom_call.1
$region0: #{tpu_custom_call.1}
  #allocation0 [shape = 'u32[]', space=smem, size = 0x4, offset = 0x4, fixed_abs, tag = 'smem constant byte address 0x4 - core index']
  #allocation1 [shape = 'u32[144,128]{1,0:T(1,128)}', space=vmem, size = 0x12000, scoped, tag = 'internal scratch']
  #allocation2 [shape = 'f32[8,128]{1,0:T(8,128)}', space=vmem, size = 0x1000, scoped, tag = 'scratch operand']
  %s0 = inlined_call_operand.hbm [shape: bf16[8,1024], index: 0, kind: input, shape index: {}]
  %s1 = inlined_call_operand.hbm [shape: bf16[1024,128], index: 1, kind: input, shape index: {}]
  %s2 = inlined_call_operand.hbm [shape: f32[1,128], index: 2, kind: input, shape index: {}]
  %s3 = inlined_call_operand.vmem [shape: f32[8,128], index: 3, kind: input, shape index: {}]
  %s4 = inlined_call_operand.vmem [shape: f32[8,128], index: 4, kind: input, shape index: {}]
  %s5 = inlined_call_operand.vmem [shape: s32[8,1], index: 5, kind: input, shape index: {}]
  %s6 = inlined_call_operand.hbm [shape: f32[1,8,128], index: 6, kind: output, shape index: {}]
  %s7 = sld [smem:[#allocation0]]
  $region54: #{tpu_custom_call.1} parent=0
    _
  %s9 = ssub.s32 1, %s7
  %s10 = scalar_select 0, %s9, %s7
  $region1: #{tpu_custom_call.1} parent=0
    #allocation3 [shape = 'u8[16384]{0}', space=vmem, size = 0x4000, scoped, tag = 'input window, operand 0, single buffered']
    #allocation4 [shape = 's32[1]{0}', space=sflag, size = 0x4, scoped, tag = 'scoped memory for tpu_custom_call.1']
    #allocation5 [shape = 's32[1]{0}', space=sflag, size = 0x4, scoped, tag = 'scoped memory for tpu_custom_call.1']
    #allocation6 [shape = 'u8[262144]{0}', space=vmem, size = 0x40000, scoped, tag = 'input window, operand 1, single buffered']
    #allocation7 [shape = 's32[1]{0}', space=sflag, size = 0x4, scoped, tag = 'scoped memory for tpu_custom_call.1']
    #allocation8 [shape = 'u8[512]{0}', space=vmem, size = 0x400, scoped, tag = 'input window, operand 2, single buffered']
    #allocation9 [shape = 'u8[4096]{0}', space=vmem, size = 0x1000, scoped, tag = 'output window, operand 0, single buffered']
    %11 = vsyncpa [#allocation4], 0
    %12 = vsyncpa [#allocation7], 0
    %13 = vsyncpa [#allocation5], 0
    // Predicated region
    $region2: #{tpu_custom_call.1} parent=1 // pred_check
      _
    $region3: #{tpu_custom_call.1} parent=1 // pred_check_branch
      %15 = sbr.rel (0) target = $region5
    $region4: #{tpu_custom_call.1} parent=1 // pred_region
      %s17 = ssub.s32 512, 512
      %18 = vsyncadd [#allocation4], %s17
      %s20 = sshll.u32 [#allocation3], 4
      %s21 = int_to_ptr.vmem [resolvable:$true] %s20
      %23 = dma.hbm_to_vmem [thread:$0]  %s0, 512, %s21, [#allocation4]
    $region5: #{tpu_custom_call.1} parent=1 // pred_fallthru
      _
    // Predicated region
    $region6: #{tpu_custom_call.1} parent=1 // pred_check
      _
    $region7: #{tpu_custom_call.1} parent=1 // pred_check_branch
      %25 = sbr.rel (0) target = $region9
    $region8: #{tpu_custom_call.1} parent=1 // pred_region
      %s27 = ssub.s32 8192, 8192
      %28 = vsyncadd [#allocation7], %s27
      %s29 = sshll.u32 [#allocation6], 4
      %s30 = int_to_ptr.vmem [resolvable:$true] %s29
      %35 = dma.hbm_to_vmem [thread:$0]  %s1, 8192, %s30, [#allocation7], 64, 64, 4
    $region9: #{tpu_custom_call.1} parent=1 // pred_fallthru
      _
    // Predicated region
    $region10: #{tpu_custom_call.1} parent=1 // pred_check
      _
    $region11: #{tpu_custom_call.1} parent=1 // pred_check_branch
      %37 = sbr.rel (0) target = $region13
    $region12: #{tpu_custom_call.1} parent=1 // pred_region
      %s39 = ssub.s32 16, 16
      %40 = vsyncadd [#allocation7], %s39
      %s42 = sshll.u32 [#allocation8], 4
      %s43 = int_to_ptr.vmem [resolvable:$true] %s42
      %45 = dma.hbm_to_vmem [thread:$0]  %s2, 16, %s43, [#allocation7]
    $region13: #{tpu_custom_call.1} parent=1 // pred_fallthru
      _
    // Predicated region
    $region14: #{tpu_custom_call.1} parent=1 // pred_check
      _
    $region15: #{tpu_custom_call.1} parent=1 // pred_check_branch
      %47 = sbr.rel (0) target = $region17
    $region16: #{tpu_custom_call.1} parent=1 // pred_region
      _
    $region17: #{tpu_custom_call.1} parent=1 // pred_fallthru
      _
    // Predicated region
    $region18: #{tpu_custom_call.1} parent=1 // pred_check
      _
    $region19: #{tpu_custom_call.1} parent=1 // pred_check_branch
      %49 = sbr.rel (0) target = $region21
    $region20: #{tpu_custom_call.1} parent=1 // pred_region
      _
    $region21: #{tpu_custom_call.1} parent=1 // pred_fallthru
      _
    // Predicated region
    $region22: #{tpu_custom_call.1} parent=1 // pred_check
      _
    $region23: #{tpu_custom_call.1} parent=1 // pred_check_branch
      %51 = sbr.rel (0) target = $region25
    $region24: #{tpu_custom_call.1} parent=1 // pred_region
      _
    $region25: #{tpu_custom_call.1} parent=1 // pred_fallthru
      _
    // Predicated region
    $region26: #{tpu_custom_call.1} parent=1 // pred_check
      _
    $region27: #{tpu_custom_call.1} parent=1 // pred_check_branch
      %53 = sbr.rel (0) target = $region29
    $region28: #{tpu_custom_call.1} parent=1 // pred_region
      %54 = dma.done [#allocation4], 512
    $region29: #{tpu_custom_call.1} parent=1 // pred_fallthru
      _
    // Predicated region
    $region30: #{tpu_custom_call.1} parent=1 // pred_check
      _
    $region31: #{tpu_custom_call.1} parent=1 // pred_check_branch
      %56 = sbr.rel (0) target = $region33
    $region32: #{tpu_custom_call.1} parent=1 // pred_region
      %57 = dma.done [#allocation7], 8192
    $region33: #{tpu_custom_call.1} parent=1 // pred_fallthru
      _
    // Predicated region
    $region34: #{tpu_custom_call.1} parent=1 // pred_check
      _
    $region35: #{tpu_custom_call.1} parent=1 // pred_check_branch
      %59 = sbr.rel (0) target = $region37
    $region36: #{tpu_custom_call.1} parent=1 // pred_region
      %60 = dma.done [#allocation7], 16
    $region37: #{tpu_custom_call.1} parent=1 // pred_fallthru
      _
    %p62 = scmp.eq.s32.totalorder 0, 0
    // Predicated region
    $region38: #{tpu_custom_call.1} parent=1 // pred_check
      %p63 = pneg %p62
    $region39: #{tpu_custom_call.1} parent=1 // pred_check_branch
      %65 = sbr.rel (%p63) target = $region41
    $region40: #{tpu_custom_call.1} parent=1 // pred_region
      %66 = vst [vmem:[#allocation2] sm:$0xff] 0.0
    $region41: #{tpu_custom_call.1} parent=1 // pred_fallthru
      _
    %v67 = vld [vmem:[#allocation2] sm:$0xff]
    %v68 = vld [vmem:[#allocation3] sm:$0xff]
    %v69 = vld [vmem:[#allocation3 + $0x8] sm:$0xff]
    %v70 = vld [vmem:[#allocation3 + $0x10] sm:$0xff]
    %v71 = vld [vmem:[#allocation3 + $0x18] sm:$0xff]
    %v72 = vld [vmem:[#allocation6] sm:$0xf]
    %v73 = vld [vmem:[#allocation6 + $0x4] sm:$0xf]
    %v74 = vld [vmem:[#allocation6 + $0x8] sm:$0xf]
    %v75 = vld [vmem:[#allocation6 + $0xc] sm:$0xf]
    %v76 = vld [vmem:[#allocation6 + $0x10] sm:$0xf]
    %v77 = vld [vmem:[#allocation6 + $0x14] sm:$0xf]
    %v78 = vld [vmem:[#allocation6 + $0x18] sm:$0xf]
    %v79 = vld [vmem:[#allocation6 + $0x1c] sm:$0xf]
    %v80 = vld [vmem:[#allocation6 + $0x20] sm:$0xf]
    %v81 = vld [vmem:[#allocation6 + $0x24] sm:$0xf]
    %v82 = vld [vmem:[#allocation6 + $0x28] sm:$0xf]
    %v83 = vld [vmem:[#allocation6 + $0x2c] sm:$0xf]
    %v84 = vld [vmem:[#allocation6 + $0x30] sm:$0xf]
    %v85 = vld [vmem:[#allocation6 + $0x34] sm:$0xf]
    %v86 = vld [vmem:[#allocation6 + $0x38] sm:$0xf]
    %v87 = vld [vmem:[#allocation6 + $0x3c] sm:$0xf]
    %v88 = vld [vmem:[#allocation6 + $0x40] sm:$0xf]
    %v89 = vld [vmem:[#allocation6 + $0x44] sm:$0xf]
    %v90 = vld [vmem:[#allocation6 + $0x48] sm:$0xf]
    %v91 = vld [vmem:[#allocation6 + $0x4c] sm:$0xf]
    %v92 = vld [vmem:[#allocation6 + $0x50] sm:$0xf]
    %v93 = vld [vmem:[#allocation6 + $0x54] sm:$0xf]
    %v94 = vld [vmem:[#allocation6 + $0x58] sm:$0xf]
    %v95 = vld [vmem:[#allocation6 + $0x5c] sm:$0xf]
    %v96 = vld [vmem:[#allocation6 + $0x60] sm:$0xf]
    %v97 = vld [vmem:[#allocation6 + $0x64] sm:$0xf]
    %v98 = vld [vmem:[#allocation6 + $0x68] sm:$0xf]
    %v99 = vld [vmem:[#allocation6 + $0x6c] sm:$0xf]
    %v100 = vld [vmem:[#allocation6 + $0x70] sm:$0xf]
    %v101 = vld [vmem:[#allocation6 + $0x74] sm:$0xf]
    %v102 = vld [vmem:[#allocation6 + $0x78] sm:$0xf]
    %v103 = vld [vmem:[#allocation6 + $0x7c] sm:$0xf]
    %v104 = vld [vmem:[#allocation6 + $0x80] sm:$0xf]
    %v105 = vld [vmem:[#allocation6 + $0x84] sm:$0xf]
    %v106 = vld [vmem:[#allocation6 + $0x88] sm:$0xf]
    %v107 = vld [vmem:[#allocation6 + $0x8c] sm:$0xf]
    %v108 = vld [vmem:[#allocation6 + $0x90] sm:$0xf]
    %v109 = vld [vmem:[#allocation6 + $0x94] sm:$0xf]
    %v110 = vld [vmem:[#allocation6 + $0x98] sm:$0xf]
    %v111 = vld [vmem:[#allocation6 + $0x9c] sm:$0xf]
    %v112 = vld [vmem:[#allocation6 + $0xa0] sm:$0xf]
    %v113 = vld [vmem:[#allocation6 + $0xa4] sm:$0xf]
    %v114 = vld [vmem:[#allocation6 + $0xa8] sm:$0xf]
    %v115 = vld [vmem:[#allocation6 + $0xac] sm:$0xf]
    %v116 = vld [vmem:[#allocation6 + $0xb0] sm:$0xf]
    %v117 = vld [vmem:[#allocation6 + $0xb4] sm:$0xf]
    %v118 = vld [vmem:[#allocation6 + $0xb8] sm:$0xf]
    %v119 = vld [vmem:[#allocation6 + $0xbc] sm:$0xf]
    %v120 = vld [vmem:[#allocation6 + $0xc0] sm:$0xf]
    %v121 = vld [vmem:[#allocation6 + $0xc4] sm:$0xf]
    %v122 = vld [vmem:[#allocation6 + $0xc8] sm:$0xf]
    %v123 = vld [vmem:[#allocation6 + $0xcc] sm:$0xf]
    %v124 = vld [vmem:[#allocation6 + $0xd0] sm:$0xf]
    %v125 = vld [vmem:[#allocation6 + $0xd4] sm:$0xf]
    %v126 = vld [vmem:[#allocation6 + $0xd8] sm:$0xf]
    %v127 = vld [vmem:[#allocation6 + $0xdc] sm:$0xf]
    %v128 = vld [vmem:[#allocation6 + $0xe0] sm:$0xf]
    %v129 = vld [vmem:[#allocation6 + $0xe4] sm:$0xf]
    %v130 = vld [vmem:[#allocation6 + $0xe8] sm:$0xf]
    %v131 = vld [vmem:[#allocation6 + $0xec] sm:$0xf]
    %v132 = vld [vmem:[#allocation6 + $0xf0] sm:$0xf]
    %v133 = vld [vmem:[#allocation6 + $0xf4] sm:$0xf]
    %v134 = vld [vmem:[#allocation6 + $0xf8] sm:$0xf]
    %v135 = vld [vmem:[#allocation6 + $0xfc] sm:$0xf]
    %v136 = vld [vmem:[#allocation6 + $0x100] sm:$0xf]
    %v137 = vld [vmem:[#allocation6 + $0x104] sm:$0xf]
    %v138 = vld [vmem:[#allocation6 + $0x108] sm:$0xf]
    %v139 = vld [vmem:[#allocation6 + $0x10c] sm:$0xf]
    %v140 = vld [vmem:[#allocation6 + $0x110] sm:$0xf]
    %v141 = vld [vmem:[#allocation6 + $0x114] sm:$0xf]
    %v142 = vld [vmem:[#allocation6 + $0x118] sm:$0xf]
    %v143 = vld [vmem:[#allocation6 + $0x11c] sm:$0xf]
    %v144 = vld [vmem:[#allocation6 + $0x120] sm:$0xf]
    %v145 = vld [vmem:[#allocation6 + $0x124] sm:$0xf]
    %v146 = vld [vmem:[#allocation6 + $0x128] sm:$0xf]
    %v147 = vld [vmem:[#allocation6 + $0x12c] sm:$0xf]
    %v148 = vld [vmem:[#allocation6 + $0x130] sm:$0xf]
    %v149 = vld [vmem:[#allocation6 + $0x134] sm:$0xf]
    %v150 = vld [vmem:[#allocation6 + $0x138] sm:$0xf]
    %v151 = vld [vmem:[#allocation6 + $0x13c] sm:$0xf]
    %v152 = vld [vmem:[#allocation6 + $0x140] sm:$0xf]
    %v153 = vld [vmem:[#allocation6 + $0x144] sm:$0xf]
    %v154 = vld [vmem:[#allocation6 + $0x148] sm:$0xf]
    %v155 = vld [vmem:[#allocation6 + $0x14c] sm:$0xf]
    %v156 = vld [vmem:[#allocation6 + $0x150] sm:$0xf]
    %v157 = vld [vmem:[#allocation6 + $0x154] sm:$0xf]
    %v158 = vld [vmem:[#allocation6 + $0x158] sm:$0xf]
    %v159 = vld [vmem:[#allocation6 + $0x15c] sm:$0xf]
    %v160 = vld [vmem:[#allocation6 + $0x160] sm:$0xf]
    %v161 = vld [vmem:[#allocation6 + $0x164] sm:$0xf]
    %v162 = vld [vmem:[#allocation6 + $0x168] sm:$0xf]
    %v163 = vld [vmem:[#allocation6 + $0x16c] sm:$0xf]
    %v164 = vld [vmem:[#allocation6 + $0x170] sm:$0xf]
    %v165 = vld [vmem:[#allocation6 + $0x174] sm:$0xf]
    %v166 = vld [vmem:[#allocation6 + $0x178] sm:$0xf]
    %v167 = vld [vmem:[#allocation6 + $0x17c] sm:$0xf]
    %v168 = vld [vmem:[#allocation6 + $0x180] sm:$0xf]
    %v169 = vld [vmem:[#allocation6 + $0x184] sm:$0xf]
    %v170 = vld [vmem:[#allocation6 + $0x188] sm:$0xf]
    %v171 = vld [vmem:[#allocation6 + $0x18c] sm:$0xf]
    %v172 = vld [vmem:[#allocation6 + $0x190] sm:$0xf]
    %v173 = vld [vmem:[#allocation6 + $0x194] sm:$0xf]
    %v174 = vld [vmem:[#allocation6 + $0x198] sm:$0xf]
    %v175 = vld [vmem:[#allocation6 + $0x19c] sm:$0xf]
    %v176 = vld [vmem:[#allocation6 + $0x1a0] sm:$0xf]
    %v177 = vld [vmem:[#allocation6 + $0x1a4] sm:$0xf]
    %v178 = vld [vmem:[#allocation6 + $0x1a8] sm:$0xf]
    %v179 = vld [vmem:[#allocation6 + $0x1ac] sm:$0xf]
    %v180 = vld [vmem:[#allocation6 + $0x1b0] sm:$0xf]
    %v181 = vld [vmem:[#allocation6 + $0x1b4] sm:$0xf]
    %v182 = vld [vmem:[#allocation6 + $0x1b8] sm:$0xf]
    %v183 = vld [vmem:[#allocation6 + $0x1bc] sm:$0xf]
    %v184 = vld [vmem:[#allocation6 + $0x1c0] sm:$0xf]
    %v185 = vld [vmem:[#allocation6 + $0x1c4] sm:$0xf]
    %v186 = vld [vmem:[#allocation6 + $0x1c8] sm:$0xf]
    %v187 = vld [vmem:[#allocation6 + $0x1cc] sm:$0xf]
    %v188 = vld [vmem:[#allocation6 + $0x1d0] sm:$0xf]
    %v189 = vld [vmem:[#allocation6 + $0x1d4] sm:$0xf]
    %v190 = vld [vmem:[#allocation6 + $0x1d8] sm:$0xf]
    %v191 = vld [vmem:[#allocation6 + $0x1dc] sm:$0xf]
    %v192 = vld [vmem:[#allocation6 + $0x1e0] sm:$0xf]
    %v193 = vld [vmem:[#allocation6 + $0x1e4] sm:$0xf]
    %v194 = vld [vmem:[#allocation6 + $0x1e8] sm:$0xf]
    %v195 = vld [vmem:[#allocation6 + $0x1ec] sm:$0xf]
    %v196 = vld [vmem:[#allocation6 + $0x1f0] sm:$0xf]
    %v197 = vld [vmem:[#allocation6 + $0x1f4] sm:$0xf]
    %v198 = vld [vmem:[#allocation6 + $0x1f8] sm:$0xf]
    %v199 = vld [vmem:[#allocation6 + $0x1fc] sm:$0xf]
    %v204 = vunpack.c.l.b16 %v68
    %v205 = vunpack.c.h.b16 %v68
    %v206 = vunpack.c.l.b16 %v69
    %v207 = vunpack.c.h.b16 %v69
    %v208 = vunpack.c.l.b16 %v70
    %v209 = vunpack.c.h.b16 %v70
    %v210 = vunpack.c.l.b16 %v71
    %v211 = vunpack.c.h.b16 %v71
    %v212 = vpack.c.b16 %v204, %v204
    %v213 = vpack.c.b16 %v205, %v205
    %v214 = vpack.c.b16 %v206, %v206
    %v215 = vpack.c.b16 %v207, %v207
    %v216 = vpack.c.b16 %v208, %v208
    %v217 = vpack.c.b16 %v209, %v209
    %v218 = vpack.c.b16 %v210, %v210
    %v219 = vpack.c.b16 %v211, %v211
    %v356 = vunpack.c.l.b16 %v72
    %v357 = vunpack.c.l.b16 %v73
    %v358 = vunpack.c.l.b16 %v74
    %v359 = vunpack.c.l.b16 %v75
    %v360 = vunpack.c.l.b16 %v76
    %v361 = vunpack.c.l.b16 %v77
    %v362 = vunpack.c.l.b16 %v78
    %v363 = vunpack.c.l.b16 %v79
    %v364 = vunpack.c.l.b16 %v80
    %v365 = vunpack.c.l.b16 %v81
    %v366 = vunpack.c.l.b16 %v82
    %v367 = vunpack.c.l.b16 %v83
    %v368 = vunpack.c.l.b16 %v84
    %v369 = vunpack.c.l.b16 %v85
    %v370 = vunpack.c.l.b16 %v86
    %v371 = vunpack.c.l.b16 %v87
    %v372 = vunpack.c.l.b16 %v88
    %v373 = vunpack.c.l.b16 %v89
    %v374 = vunpack.c.l.b16 %v90
    %v375 = vunpack.c.l.b16 %v91
    %v376 = vunpack.c.l.b16 %v92
    %v377 = vunpack.c.l.b16 %v93
    %v378 = vunpack.c.l.b16 %v94
    %v379 = vunpack.c.l.b16 %v95
    %v380 = vunpack.c.l.b16 %v96
    %v381 = vunpack.c.l.b16 %v97
    %v382 = vunpack.c.l.b16 %v98
    %v383 = vunpack.c.l.b16 %v99
    %v384 = vunpack.c.l.b16 %v100
    %v385 = vunpack.c.l.b16 %v101
    %v386 = vunpack.c.l.b16 %v102
    %v387 = vunpack.c.l.b16 %v103
    %v388 = vunpack.c.l.b16 %v104
    %v389 = vunpack.c.l.b16 %v105
    %v390 = vunpack.c.l.b16 %v106
    %v391 = vunpack.c.l.b16 %v107
    %v392 = vunpack.c.l.b16 %v108
    %v393 = vunpack.c.l.b16 %v109
    %v394 = vunpack.c.l.b16 %v110
    %v395 = vunpack.c.l.b16 %v111
    %v396 = vunpack.c.l.b16 %v112
    %v397 = vunpack.c.l.b16 %v113
    %v398 = vunpack.c.l.b16 %v114
    %v399 = vunpack.c.l.b16 %v115
    %v400 = vunpack.c.l.b16 %v116
    %v401 = vunpack.c.l.b16 %v117
    %v402 = vunpack.c.l.b16 %v118
    %v403 = vunpack.c.l.b16 %v119
    %v404 = vunpack.c.l.b16 %v120
    %v405 = vunpack.c.l.b16 %v121
    %v406 = vunpack.c.l.b16 %v122
    %v407 = vunpack.c.l.b16 %v123
    %v408 = vunpack.c.l.b16 %v124
    %v409 = vunpack.c.l.b16 %v125
    %v410 = vunpack.c.l.b16 %v126
    %v411 = vunpack.c.l.b16 %v127
    %v412 = vunpack.c.l.b16 %v128
    %v413 = vunpack.c.l.b16 %v129
    %v414 = vunpack.c.l.b16 %v130
    %v415 = vunpack.c.l.b16 %v131
    %v416 = vunpack.c.l.b16 %v132
    %v417 = vunpack.c.l.b16 %v133
    %v418 = vunpack.c.l.b16 %v134
    %v419 = vunpack.c.l.b16 %v135
    %v420 = vunpack.c.l.b16 %v136
    %v421 = vunpack.c.l.b16 %v137
    %v422 = vunpack.c.l.b16 %v138
    %v423 = vunpack.c.l.b16 %v139
    %v424 = vunpack.c.l.b16 %v140
    %v425 = vunpack.c.l.b16 %v141
    %v426 = vunpack.c.l.b16 %v142
    %v427 = vunpack.c.l.b16 %v143
    %v428 = vunpack.c.l.b16 %v144
    %v429 = vunpack.c.l.b16 %v145
    %v430 = vunpack.c.l.b16 %v146
    %v431 = vunpack.c.l.b16 %v147
    %v432 = vunpack.c.l.b16 %v148
    %v433 = vunpack.c.l.b16 %v149
    %v434 = vunpack.c.l.b16 %v150
    %v435 = vunpack.c.l.b16 %v151
    %v436 = vunpack.c.l.b16 %v152
    %v437 = vunpack.c.l.b16 %v153
    %v438 = vunpack.c.l.b16 %v154
    %v439 = vunpack.c.l.b16 %v155
    %v440 = vunpack.c.l.b16 %v156
    %v441 = vunpack.c.l.b16 %v157
    %v442 = vunpack.c.l.b16 %v158
    %v443 = vunpack.c.l.b16 %v159
    %v444 = vunpack.c.l.b16 %v160
    %v445 = vunpack.c.l.b16 %v161
    %v446 = vunpack.c.l.b16 %v162
    %v447 = vunpack.c.l.b16 %v163
    %v448 = vunpack.c.l.b16 %v164
    %v449 = vunpack.c.l.b16 %v165
    %v450 = vunpack.c.l.b16 %v166
    %v451 = vunpack.c.l.b16 %v167
    %v452 = vunpack.c.l.b16 %v168
    %v453 = vunpack.c.l.b16 %v169
    %v454 = vunpack.c.l.b16 %v170
    %v455 = vunpack.c.l.b16 %v171
    %v456 = vunpack.c.l.b16 %v172
    %v457 = vunpack.c.l.b16 %v173
    %v458 = vunpack.c.l.b16 %v174
    %v459 = vunpack.c.l.b16 %v175
    %v460 = vunpack.c.l.b16 %v176
    %v461 = vunpack.c.l.b16 %v177
    %v462 = vunpack.c.l.b16 %v178
    %v463 = vunpack.c.l.b16 %v179
    %v464 = vunpack.c.l.b16 %v180
    %v465 = vunpack.c.l.b16 %v181
    %v466 = vunpack.c.l.b16 %v182
    %v467 = vunpack.c.l.b16 %v183
    %v468 = vunpack.c.l.b16 %v184
    %v469 = vunpack.c.l.b16 %v185
    %v470 = vunpack.c.l.b16 %v186
    %v471 = vunpack.c.l.b16 %v187
    %v472 = vunpack.c.l.b16 %v188
    %v473 = vunpack.c.l.b16 %v189
    %v474 = vunpack.c.l.b16 %v190
    %v475 = vunpack.c.l.b16 %v191
    %v476 = vunpack.c.l.b16 %v192
    %v477 = vunpack.c.l.b16 %v193
    %v478 = vunpack.c.l.b16 %v194
    %v479 = vunpack.c.l.b16 %v195
    %v480 = vunpack.c.l.b16 %v196
    %v481 = vunpack.c.l.b16 %v197
    %v482 = vunpack.c.l.b16 %v198
    %v483 = vunpack.c.l.b16 %v199
    %v484 = vpack.c.b16 %v357, %v356
    %v485 = vpack.c.b16 %v359, %v358
    %v486 = vpack.c.b16 %v361, %v360
    %v487 = vpack.c.b16 %v363, %v362
    %v488 = vpack.c.b16 %v365, %v364
    %v489 = vpack.c.b16 %v367, %v366
    %v490 = vpack.c.b16 %v369, %v368
    %v491 = vpack.c.b16 %v371, %v370
    %v492 = vpack.c.b16 %v373, %v372
    %v493 = vpack.c.b16 %v375, %v374
    %v494 = vpack.c.b16 %v377, %v376
    %v495 = vpack.c.b16 %v379, %v378
    %v496 = vpack.c.b16 %v381, %v380
    %v497 = vpack.c.b16 %v383, %v382
    %v498 = vpack.c.b16 %v385, %v384
    %v499 = vpack.c.b16 %v387, %v386
    %v500 = vpack.c.b16 %v389, %v388
    %v501 = vpack.c.b16 %v391, %v390
    %v502 = vpack.c.b16 %v393, %v392
    %v503 = vpack.c.b16 %v395, %v394
    %v504 = vpack.c.b16 %v397, %v396
    %v505 = vpack.c.b16 %v399, %v398
    %v506 = vpack.c.b16 %v401, %v400
    %v507 = vpack.c.b16 %v403, %v402
    %v508 = vpack.c.b16 %v405, %v404
    %v509 = vpack.c.b16 %v407, %v406
    %v510 = vpack.c.b16 %v409, %v408
    %v511 = vpack.c.b16 %v411, %v410
    %v512 = vpack.c.b16 %v413, %v412
    %v513 = vpack.c.b16 %v415, %v414
    %v514 = vpack.c.b16 %v417, %v416
    %v515 = vpack.c.b16 %v419, %v418
    %v516 = vpack.c.b16 %v421, %v420
    %v517 = vpack.c.b16 %v423, %v422
    %v518 = vpack.c.b16 %v425, %v424
    %v519 = vpack.c.b16 %v427, %v426
    %v520 = vpack.c.b16 %v429, %v428
    %v521 = vpack.c.b16 %v431, %v430
    %v522 = vpack.c.b16 %v433, %v432
    %v523 = vpack.c.b16 %v435, %v434
    %v524 = vpack.c.b16 %v437, %v436
    %v525 = vpack.c.b16 %v439, %v438
    %v526 = vpack.c.b16 %v441, %v440
    %v527 = vpack.c.b16 %v443, %v442
    %v528 = vpack.c.b16 %v445, %v444
    %v529 = vpack.c.b16 %v447, %v446
    %v530 = vpack.c.b16 %v449, %v448
    %v531 = vpack.c.b16 %v451, %v450
    %v532 = vpack.c.b16 %v453, %v452
    %v533 = vpack.c.b16 %v455, %v454
    %v534 = vpack.c.b16 %v457, %v456
    %v535 = vpack.c.b16 %v459, %v458
    %v536 = vpack.c.b16 %v461, %v460
    %v537 = vpack.c.b16 %v463, %v462
    %v538 = vpack.c.b16 %v465, %v464
    %v539 = vpack.c.b16 %v467, %v466
    %v540 = vpack.c.b16 %v469, %v468
    %v541 = vpack.c.b16 %v471, %v470
    %v542 = vpack.c.b16 %v473, %v472
    %v543 = vpack.c.b16 %v475, %v474
    %v544 = vpack.c.b16 %v477, %v476
    %v545 = vpack.c.b16 %v479, %v478
    %v546 = vpack.c.b16 %v481, %v480
    %v547 = vpack.c.b16 %v483, %v482
    %612 = vmatprep.subr.bf16.mxu0 0
    %613 = vmatpush1.bf16.msra.mxu0 %v491
    %614 = vmatprep.subr.bf16.mxu0 0
    %615 = vmatpush1.bf16.msra.mxu0 %v490
    %616 = vmatprep.subr.bf16.mxu0 0
    %617 = vmatpush1.bf16.msra.mxu0 %v489
    %618 = vmatprep.subr.bf16.mxu0 0
    %619 = vmatpush1.bf16.msra.mxu0 %v488
    %620 = vmatprep.subr.bf16.mxu0 0
    %621 = vmatpush1.bf16.msra.mxu0 %v487
    %622 = vmatprep.subr.bf16.mxu0 0
    %623 = vmatpush1.bf16.msra.mxu0 %v486
    %624 = vmatprep.subr.bf16.mxu0 0
    %625 = vmatpush1.bf16.msra.mxu0 %v485
    %626 = vmatprep.subr.bf16.mxu0 0
    %627 = vmatpush1.bf16.msra.mxu0 %v484
    %628 = vmatprep.subr.bf16.mxu0 0
    %629 = vmatpush2.bf16.msra.mxu0 %v499
    %630 = vmatprep.subr.bf16.mxu0 0
    %631 = vmatpush2.bf16.msra.mxu0 %v498
    %632 = vmatprep.subr.bf16.mxu0 0
    %633 = vmatpush2.bf16.msra.mxu0 %v497
    %634 = vmatprep.subr.bf16.mxu0 0
    %635 = vmatpush2.bf16.msra.mxu0 %v496
    %636 = vmatprep.subr.bf16.mxu0 0
    %637 = vmatpush2.bf16.msra.mxu0 %v495
    %638 = vmatprep.subr.bf16.mxu0 0
    %639 = vmatpush2.bf16.msra.mxu0 %v494
    %640 = vmatprep.subr.bf16.mxu0 0
    %641 = vmatpush2.bf16.msra.mxu0 %v493
    %642 = vmatprep.subr.bf16.mxu0 0
    %643 = vmatpush2.bf16.msra.mxu0 %v492
    %644 = vmatprep.mubr.bf16.mxu0 %v213
    %645 = vmatmul.mubr.bf16.gmra.mxu0 %v212
    %v646 = vpop.f32.mrf.mxu0
    %v647 = vadd.f32 0.0, %v646
    %v648 = vpop.f32.mrf.mxu0
    %v649 = vpop.f32.mrf.mxu0
    %v650 = vpop.f32.mrf.mxu0
    %651 = vdwg.mxu0
    %652 = vmatprep.subr.bf16.mxu0 0
    %653 = vmatpush1.bf16.msra.mxu0 %v507
    %654 = vmatprep.subr.bf16.mxu0 0
    %655 = vmatpush1.bf16.msra.mxu0 %v506
    %656 = vmatprep.subr.bf16.mxu0 0
    %657 = vmatpush1.bf16.msra.mxu0 %v505
    %658 = vmatprep.subr.bf16.mxu0 0
    %659 = vmatpush1.bf16.msra.mxu0 %v504
    %660 = vmatprep.subr.bf16.mxu0 0
    %661 = vmatpush1.bf16.msra.mxu0 %v503
    %662 = vmatprep.subr.bf16.mxu0 0
    %663 = vmatpush1.bf16.msra.mxu0 %v502
    %664 = vmatprep.subr.bf16.mxu0 0
    %665 = vmatpush1.bf16.msra.mxu0 %v501
    %666 = vmatprep.subr.bf16.mxu0 0
    %667 = vmatpush1.bf16.msra.mxu0 %v500
    %668 = vmatprep.subr.bf16.mxu0 0
    %669 = vmatpush2.bf16.msra.mxu0 %v515
    %670 = vmatprep.subr.bf16.mxu0 0
    %671 = vmatpush2.bf16.msra.mxu0 %v514
    %672 = vmatprep.subr.bf16.mxu0 0
    %673 = vmatpush2.bf16.msra.mxu0 %v513
    %674 = vmatprep.subr.bf16.mxu0 0
    %675 = vmatpush2.bf16.msra.mxu0 %v512
    %676 = vmatprep.subr.bf16.mxu0 0
    %677 = vmatpush2.bf16.msra.mxu0 %v511
    %678 = vmatprep.subr.bf16.mxu0 0
    %679 = vmatpush2.bf16.msra.mxu0 %v510
    %680 = vmatprep.subr.bf16.mxu0 0
    %681 = vmatpush2.bf16.msra.mxu0 %v509
    %682 = vmatprep.subr.bf16.mxu0 0
    %683 = vmatpush2.bf16.msra.mxu0 %v508
    %684 = vmatprep.mubr.bf16.mxu0 %v215
    %685 = vmatmul.mubr.bf16.gmra.mxu0 %v214
    %v686 = vpop.f32.mrf.mxu0
    %v687 = vadd.f32 %v647, %v686
    %v688 = vpop.f32.mrf.mxu0
    %v689 = vpop.f32.mrf.mxu0
    %v690 = vpop.f32.mrf.mxu0
    %691 = vdwg.mxu0
    %692 = vmatprep.subr.bf16.mxu0 0
    %693 = vmatpush1.bf16.msra.mxu0 %v523
    %694 = vmatprep.subr.bf16.mxu0 0
    %695 = vmatpush1.bf16.msra.mxu0 %v522
    %696 = vmatprep.subr.bf16.mxu0 0
    %697 = vmatpush1.bf16.msra.mxu0 %v521
    %698 = vmatprep.subr.bf16.mxu0 0
    %699 = vmatpush1.bf16.msra.mxu0 %v520
    %700 = vmatprep.subr.bf16.mxu0 0
    %701 = vmatpush1.bf16.msra.mxu0 %v519
    %702 = vmatprep.subr.bf16.mxu0 0
    %703 = vmatpush1.bf16.msra.mxu0 %v518
    %704 = vmatprep.subr.bf16.mxu0 0
    %705 = vmatpush1.bf16.msra.mxu0 %v517
    %706 = vmatprep.subr.bf16.mxu0 0
    %707 = vmatpush1.bf16.msra.mxu0 %v516
    %708 = vmatprep.subr.bf16.mxu0 0
    %709 = vmatpush2.bf16.msra.mxu0 %v531
    %710 = vmatprep.subr.bf16.mxu0 0
    %711 = vmatpush2.bf16.msra.mxu0 %v530
    %712 = vmatprep.subr.bf16.mxu0 0
    %713 = vmatpush2.bf16.msra.mxu0 %v529
    %714 = vmatprep.subr.bf16.mxu0 0
    %715 = vmatpush2.bf16.msra.mxu0 %v528
    %716 = vmatprep.subr.bf16.mxu0 0
    %717 = vmatpush2.bf16.msra.mxu0 %v527
    %718 = vmatprep.subr.bf16.mxu0 0
    %719 = vmatpush2.bf16.msra.mxu0 %v526
    %720 = vmatprep.subr.bf16.mxu0 0
    %721 = vmatpush2.bf16.msra.mxu0 %v525
    %722 = vmatprep.subr.bf16.mxu0 0
    %723 = vmatpush2.bf16.msra.mxu0 %v524
    %724 = vmatprep.mubr.bf16.mxu0 %v217
    %725 = vmatmul.mubr.bf16.gmra.mxu0 %v216
    %v726 = vpop.f32.mrf.mxu0
    %v727 = vadd.f32 %v687, %v726
    %v728 = vpop.f32.mrf.mxu0
    %v729 = vpop.f32.mrf.mxu0
    %v730 = vpop.f32.mrf.mxu0
    %731 = vdwg.mxu0
    %732 = vmatprep.subr.bf16.mxu0 0
    %733 = vmatpush1.bf16.msra.mxu0 %v539
    %734 = vmatprep.subr.bf16.mxu0 0
    %735 = vmatpush1.bf16.msra.mxu0 %v538
    %736 = vmatprep.subr.bf16.mxu0 0
    %737 = vmatpush1.bf16.msra.mxu0 %v537
    %738 = vmatprep.subr.bf16.mxu0 0
    %739 = vmatpush1.bf16.msra.mxu0 %v536
    %740 = vmatprep.subr.bf16.mxu0 0
    %741 = vmatpush1.bf16.msra.mxu0 %v535
    %742 = vmatprep.subr.bf16.mxu0 0
    %743 = vmatpush1.bf16.msra.mxu0 %v534
    %744 = vmatprep.subr.bf16.mxu0 0
    %745 = vmatpush1.bf16.msra.mxu0 %v533
    %746 = vmatprep.subr.bf16.mxu0 0
    %747 = vmatpush1.bf16.msra.mxu0 %v532
    %748 = vmatprep.subr.bf16.mxu0 0
    %749 = vmatpush2.bf16.msra.mxu0 %v547
    %750 = vmatprep.subr.bf16.mxu0 0
    %751 = vmatpush2.bf16.msra.mxu0 %v546
    %752 = vmatprep.subr.bf16.mxu0 0
    %753 = vmatpush2.bf16.msra.mxu0 %v545
    %754 = vmatprep.subr.bf16.mxu0 0
    %755 = vmatpush2.bf16.msra.mxu0 %v544
    %756 = vmatprep.subr.bf16.mxu0 0
    %757 = vmatpush2.bf16.msra.mxu0 %v543
    %758 = vmatprep.subr.bf16.mxu0 0
    %759 = vmatpush2.bf16.msra.mxu0 %v542
    %760 = vmatprep.subr.bf16.mxu0 0
    %761 = vmatpush2.bf16.msra.mxu0 %v541
    %762 = vmatprep.subr.bf16.mxu0 0
    %763 = vmatpush2.bf16.msra.mxu0 %v540
    %764 = vmatprep.mubr.bf16.mxu0 %v219
    %765 = vmatmul.mubr.bf16.gmra.mxu0 %v218
    %v766 = vpop.f32.mrf.mxu0
    %v767 = vadd.f32 %v727, %v766
    %v768 = vpop.f32.mrf.mxu0
    %v769 = vpop.f32.mrf.mxu0
    %v770 = vpop.f32.mrf.mxu0
    %771 = vdwg.mxu0
    %v772 = vadd.f32 %v67, %v767
    %773 = vst [vmem:[#allocation2] sm:$0xff] %v772
    // Predicated region
    $region42: #{tpu_custom_call.1} parent=1 // pred_check
      %p774 = pneg %p62
    $region43: #{tpu_custom_call.1} parent=1 // pred_check_branch
      %776 = sbr.rel (%p774) target = $region45
    $region44: #{tpu_custom_call.1} parent=1 // pred_region
      %v777 = vlaneseq
      %v778 = vand.u32 %v777, 127
      %vm779 = vcmp.lt.s32.totalorder %v778, 16
      %v780 = vld [vmem:[%s5] sm:$0xff]
      %v781 = vld [vmem:[%s3] sm:$0xff]
      %v782 = vsel %vm779, %v781, -1e+30
      %783 = vmax.xlane.f32.xlu0 %v782
      %v784 = vpop.xlane.xlu0 %783
      %v785 = vsub.f32 %v782, %v784
      %v786 = vmul.f32 %v785, 1.442695
      %v787 = vpow.pop %v786
      %788 = vadd.xlane.f32.xlu0 %v787
      %v789 = vpop.xlane.xlu0 %788
      %v790 = vlog2.pop %v789
      %v791 = vmul.f32 %v790, 0.6931472
      %v792 = vadd.f32 %v791, %v784
      %793 = vset.pattern.permute.xlu0 0
      %794 = vperm.xlu0 %793, %v780
      %v795 = vpop.permute.xlu0 %794
      %vm796 = vcmp.eq.s32.totalorder %v778, %v795
      %v797 = vsel %vm796, %v782, 0.0
      %798 = vadd.xlane.f32.xlu0 %v797
      %v799 = vpop.xlane.xlu0 %798
      %v800 = vsub.f32 %v792, %v799
      %vm801 = vcmask 7168
      %v802 = vsel %vm801, %v800, 0.0
      %803 = vadd.xlane.f32.xlu0 %v802
      %v804 = vpop.xlane.xlu0 %803
      %v805 = vrot.slane %v804, 4
      %v806 = vadd.f32 %v804, %v805
      %v807 = vrot.slane %v806, 2
      %v808 = vadd.f32 %v806, %v807
      %v809 = vrot.slane %v808, 1
      %v810 = vadd.f32 %v808, %v809
      %s811 = vtos %v810
      %v812 = vrcp.pop 8.0
      %s813 = vtos %v812
      %s814 = smul.f32 %s811, %s813
      %v815 = vld [vmem:[#allocation2] sm:$0xff]
      %v816 = vld [vmem:[#allocation8] sm:$0x1]
      %v818 = vlaneseq
      %v819 = vshrl.u32 %v818, 7
      %v820 = vsub.s32 0, %v819
      %v821 = vrot.slane %v816, %v820
      %v823 = vadd.f32 %v815, %v821
      %v824 = vsel %vm779, %v823, -1e+30
      %v825 = vld [vmem:[%s4] sm:$0xff]
      %v826 = vsel %vm779, %v825, -1e+30
      %v827 = vmul.f32 %v826, 0.33333334
      %v828 = vmul.f32 %v824, 0.33333334
      %829 = vmax.xlane.f32.xlu0 %v827
      %v830 = vpop.xlane.xlu0 %829
      %v831 = vsub.f32 %v827, %v830
      %v832 = vmul.f32 %v831, 1.442695
      %v833 = vpow.pop %v832
      %834 = vadd.xlane.f32.xlu0 %v833
      %v835 = vpop.xlane.xlu0 %834
      %v836 = vlog2.pop %v835
      %v837 = vmul.f32 %v836, 0.6931472
      %v838 = vadd.f32 %v837, %v830
      %v839 = vsub.f32 %v827, %v838
      %840 = vmax.xlane.f32.xlu0 %v828
      %v841 = vpop.xlane.xlu0 %840
      %v842 = vsub.f32 %v828, %v841
      %v843 = vmul.f32 %v842, 1.442695
      %v844 = vpow.pop %v843
      %845 = vadd.xlane.f32.xlu0 %v844
      %v846 = vpop.xlane.xlu0 %845
      %v847 = vlog2.pop %v846
      %v848 = vmul.f32 %v847, 0.6931472
      %v849 = vadd.f32 %v848, %v841
      %v850 = vsub.f32 %v828, %v849
      %v851 = vrcp.pop %v846
      %v852 = vmul.f32 %v844, %v851
      %v853 = vsub.f32 %v850, %v839
      %v854 = vmul.f32 %v852, %v853
      %v855 = vsel %vm779, %v854, 0.0
      %856 = vadd.xlane.f32.xlu0 %v855
      %v857 = vpop.xlane.xlu0 %856
      %v858 = vrot.slane %v857, 4
      %v859 = vadd.f32 %v857, %v858
      %v860 = vrot.slane %v859, 2
      %v861 = vadd.f32 %v859, %v860
      %v862 = vrot.slane %v861, 1
      %v863 = vadd.f32 %v861, %v862
      %s864 = vtos %v863
      %s865 = smul.f32 %s864, 9.0
      %v866 = vrcp.pop 128.0
      %s867 = vtos %v866
      %s868 = smul.f32 %s865, %s867
      %s869 = smul.f32 %s814, 0.5
      %s870 = smul.f32 %s868, 0.5
      %s871 = sadd.f32 %s869, %s870
      %v872 = vstv %s871
      %873 = vst [vmem:[#allocation9] sm:$0xff] %v872
    $region45: #{tpu_custom_call.1} parent=1 // pred_fallthru
      _
    // Predicated region
    $region46: #{tpu_custom_call.1} parent=1 // pred_check
      _
    $region47: #{tpu_custom_call.1} parent=1 // pred_check_branch
      %875 = sbr.rel (0) target = $region49
    $region48: #{tpu_custom_call.1} parent=1 // pred_region
      %s877 = ssub.s32 128, 128
      %878 = vsyncadd [#allocation5], %s877
      %s880 = sshll.u32 [#allocation9], 4
      %s881 = int_to_ptr.vmem [resolvable:$true] %s880
      %883 = dma.vmem_to_hbm [thread:$0]  %s881, 128, %s6, [#allocation5]
    $region49: #{tpu_custom_call.1} parent=1 // pred_fallthru
      _
    // Predicated region
    $region50: #{tpu_custom_call.1} parent=1 // pred_check
      _
    $region51: #{tpu_custom_call.1} parent=1 // pred_check_branch
      %885 = sbr.rel (0) target = $region53
    $region52: #{tpu_custom_call.1} parent=1 // pred_region
      %886 = dma.done [#allocation5], 128
    $region53: #{tpu_custom_call.1} parent=1 // pred_fallthru
      _
    %887 = vsyncpa [#allocation4], 1
    %888 = vsyncpa [#allocation7], 1
    %889 = vsyncpa [#allocation5], 1

</llo_original>
